<compile_context>
chip_gen: v7x
topology: tpu7x:2x2x1
jax: 0.10.0
libtpu: 0.0.40
codegen_flags: <defaults>
</compile_context>

<pallas_src>
import functools

import jax
import jax.numpy as jnp
from jax import lax
from jax.experimental import pallas as pl
from jax.experimental.pallas import tpu as pltpu


_LANE = 128
_SUBLANE = 8
_TILE_B_MAX = 1024   # sweep 512-2048: ~85% of HBM roofline vs ~63% at 256-row tiles
_SPLIT_MIN = 512     # batches >= this get >=2 grid steps so both v7x TCs are used


def _round_up(x, m):
    return ((x + m - 1) // m) * m


def _actor_critic_kernel(
    x_ref,                  # (tile_b, sd_pad)            compute_dtype
    w1_ref, b1_ref,         # (sd_pad, hidden_p) cd / (1, hidden_p) f32      shared trunk
    w_ac1_ref, b_ac1_ref,   # (hidden_p, 2*hidden_p) cd / (1, 2*hidden_p) f32  actor|critic l1 fused
    wa2_ref, ba2_ref,       # (hidden_p, lane_out) cd / (1, lane_out) f32    actor l2 (pad cols -1e30)
    wc2_ref, bc2_ref,       # (1, hidden_p) f32 row / (1, 1) f32             critic l2 as VPU reduce
    out_ref,                # (tile_b, lane_out): probs | value | zeros
    *,
    action_dim,
    compute_dtype,
):
    f32 = jnp.float32
    hidden_p = w_ac1_ref.shape[0]

    # shared trunk: Linear + ReLU (f32 accumulation, f32 bias post-accumulation)
    h = jnp.dot(x_ref[...], w1_ref[...], preferred_element_type=f32) + b1_ref[...]
    h = jnp.maximum(h, 0.0)
    hc = h.astype(compute_dtype)

    # actor-l1 and critic-l1 fused into one N=2*hidden_p (=256) matmul -> fills the
    # 256-wide v6e/v7x MXU; split column-wise after the shared ReLU.
    ac = jnp.dot(hc, w_ac1_ref[...], preferred_element_type=f32) + b_ac1_ref[...]
    ac = jnp.maximum(ac, 0.0)
    a = ac[:, :hidden_p]
    c = ac[:, hidden_p:]

    # actor-l2 + softmax over lane-padded logits (padded columns -> prob exactly 0).
    logits = (jnp.dot(a.astype(compute_dtype), wa2_ref[...],
                      preferred_element_type=f32) + ba2_ref[...])
    m = jnp.max(logits, axis=-1, keepdims=True)
    e = jnp.exp(logits - m)
    # exact normalization (one divide per row + broadcast mul); EUP is not the bottleneck
    probs = e * (1.0 / jnp.sum(e, axis=-1, keepdims=True))

    # critic-l2 (hidden -> 1) as VPU multiply + lane reduction, keeping the MXU free.
    value = jnp.sum(c * wc2_ref[...], axis=-1, keepdims=True) + bc2_ref[...]

    # Pack value into column `action_dim` of the lane-dense output slab.
    lane = lax.broadcasted_iota(jnp.int32, probs.shape, 1)
    out_ref[...] = jnp.where(lane == action_dim, value, probs).astype(out_ref.dtype)


def init_params(key, state_dim, action_dim, hidden_dim=128, dtype=jnp.float32):
    """Deterministic init mimicking PyTorch nn.Linear default (U[-1/sqrt(fan_in), +])."""
    def linear(k, fan_in, fan_out):
        kw, kb = jax.random.split(k)
        bound = 1.0 / jnp.sqrt(jnp.asarray(fan_in, dtype))
        w = jax.random.uniform(kw, (fan_in, fan_out), dtype, -bound, bound)
        b = jax.random.uniform(kb, (1, fan_out), dtype, -bound, bound)
        return w, b

    k = jax.random.split(key, 5)
    w1, b1 = linear(k[0], state_dim, hidden_dim)     # shared
    wa1, ba1 = linear(k[1], hidden_dim, hidden_dim)  # actor l1
    wa2, ba2 = linear(k[2], hidden_dim, action_dim)  # actor l2
    wc1, bc1 = linear(k[3], hidden_dim, hidden_dim)  # critic l1
    wc2, bc2 = linear(k[4], hidden_dim, 1)           # critic l2
    return (w1, b1, wa1, ba1, wa2, ba2, wc1, bc1, wc2, bc2)


@functools.partial(jax.jit, static_argnames=("compute_dtype", "out_dtype"))
def actor_critic_forward(state, params, *, compute_dtype=jnp.float32,
                         out_dtype=jnp.float32):
    # Handle single (1-D) states like the PyTorch module.
    if state.ndim == 1:
        state = state[None, :]
    state = state.astype(jnp.float32)

    (w1, b1, wa1, ba1, wa2, ba2, wc1, bc1, wc2, bc2) = params
    batch, state_dim = state.shape
    hidden = w1.shape[1]
    action_dim = wa2.shape[1]
    f32 = jnp.float32

    # --- static padded sizes (lane-/sublane-dense layouts) ----------------------
    sd_pad = _round_up(state_dim, _SUBLANE)           # sublane-aligned K for matmul 1
    hidden_p = _round_up(hidden, _LANE)
    lane_out = _round_up(action_dim + 1, _LANE)       # probs columns + 1 value column

    # Batch tile: as big as possible (amortize per-step overhead), but give the
    # grid >= 2 steps for large batches so both v7x TensorCores get work.
    b8 = _round_up(max(batch, 1), _SUBLANE)
    if b8 >= 2 * _TILE_B_MAX:
        tile_b = _TILE_B_MAX
    elif b8 >= _SPLIT_MIN:
        tile_b = _round_up(pl.cdiv(b8, 2), _SUBLANE)
    else:
        tile_b = b8
    b_pad = _round_up(batch, tile_b)
    grid = (pl.cdiv(b_pad, tile_b),)

    # --- zero-pad parameters; pre-cast matmul operands to compute_dtype ---------
    def pad2(a, rows, cols, dtype=f32):
        a = a.astype(f32)
        a = jnp.pad(a, ((0, rows - a.shape[0]), (0, cols - a.shape[1])))
        return a.astype(dtype)

    w1p = pad2(w1, sd_pad, hidden_p, compute_dtype)
    b1p = pad2(b1.reshape(1, -1), 1, hidden_p)
    # fused actor-l1 | critic-l1: (hidden_p, 2*hidden_p) weight, (1, 2*hidden_p) bias
    w_ac1p = jnp.concatenate(
        [pad2(wa1, hidden_p, hidden_p, compute_dtype),
         pad2(wc1, hidden_p, hidden_p, compute_dtype)], axis=1)
    b_ac1p = jnp.concatenate(
        [pad2(ba1.reshape(1, -1), 1, hidden_p),
         pad2(bc1.reshape(1, -1), 1, hidden_p)], axis=1)
    wa2p = pad2(wa2, hidden_p, lane_out, compute_dtype)
    # Padded actor logit columns get a huge negative bias (kept in f32!) -> prob 0.
    ba2p = jnp.full((1, lane_out), -1e30, f32).at[:, :action_dim].set(
        ba2.astype(f32).reshape(1, -1))
    wc2p = pad2(wc2.reshape(1, -1), 1, hidden_p)      # (1, hidden_p) f32 row (VPU reduce)
    bc2p = bc2.astype(f32).reshape(1, 1)

    state_p = jnp.pad(state, ((0, b_pad - batch), (0, sd_pad - state_dim))
                      ).astype(compute_dtype)

    # --- block specs -------------------------------------------------------------
    x_spec = pl.BlockSpec((tile_b, sd_pad), lambda i: (i, 0))
    out_spec = pl.BlockSpec((tile_b, lane_out), lambda i: (i, 0))

    def resident(arr):
        # Constant index_map: weights/biases stay VMEM-resident across grid steps.
        # NOTE: pipeline_mode=pl.Buffered(1) could drop the unused 2nd buffer, but at
        # tile_b<=1024 total VMEM is only a few MiB — well under every generation's limit.
        return pl.BlockSpec(arr.shape, lambda i: (0, 0))

    in_specs = [
        x_spec,
        resident(w1p), resident(b1p),
        resident(w_ac1p), resident(b_ac1p),
        resident(wa2p), resident(ba2p),
        resident(wc2p), resident(bc2p),
    ]

    # --- advisory cost estimate ----------------------------------------------------
    csize = jnp.dtype(compute_dtype).itemsize
    flops = 2 * b_pad * (sd_pad * hidden_p + hidden_p * 2 * hidden_p
                         + hidden_p * lane_out + hidden_p)
    transcendentals = b_pad * lane_out                      # exp
    param_bytes = sum(int(a.size) * a.dtype.itemsize for a in
                      (w1p, b1p, w_ac1p, b_ac1p, wa2p, ba2p, wc2p, bc2p))
    bytes_accessed = (b_pad * sd_pad * csize
                      + b_pad * lane_out * jnp.dtype(out_dtype).itemsize
                      + param_bytes)
    cost = pl.CostEstimate(flops=flops, transcendentals=transcendentals,
                           bytes_accessed=bytes_accessed)

    kernel = functools.partial(
        _actor_critic_kernel,
        action_dim=action_dim,
        compute_dtype=compute_dtype,
    )

    slab = pl.pallas_call(
        kernel,
        out_shape=jax.ShapeDtypeStruct((b_pad, lane_out), out_dtype),
        grid=grid,
        in_specs=in_specs,
        out_specs=out_spec,
        compiler_params=pltpu.CompilerParams(
            dimension_semantics=("parallel",)),
        cost_estimate=cost,
    )(state_p, w1p, b1p, w_ac1p, b_ac1p, wa2p, ba2p, wc2p, bc2p)

    slab = slab[:batch]
    probs = slab[:, :action_dim]
    value = slab[:, action_dim]        # matches PyTorch: self.critic(x).squeeze(-1)
    return probs, value


def _reference_forward(state, params):
    """Pure-JAX reference for correctness checking."""
    if state.ndim == 1:
        state = state[None, :]
    (w1, b1, wa1, ba1, wa2, ba2, wc1, bc1, wc2, bc2) = params
    h = jnp.maximum(state @ w1 + b1, 0.0)
    a = jnp.maximum(h @ wa1 + ba1, 0.0)
    logits = a @ wa2 + ba2
    probs = jax.nn.softmax(logits, axis=-1)
    c = jnp.maximum(h @ wc1 + bc1, 0.0)
    value = (c @ wc2 + bc2).squeeze(-1)
    return probs, value


if __name__ == "__main__":
    key = jax.random.PRNGKey(0)
    k_params, k_state, k_state2 = jax.random.split(key, 3)

    # small shapes consistent with the module (hidden_dim=128 is the module default)
    batch, state_dim, action_dim, hidden_dim = 2, 16, 8, 128

    params = init_params(k_params, state_dim, action_dim, hidden_dim)

    # case 1: small batched state
    state = jax.random.normal(k_state, (batch, state_dim), dtype=jnp.float32)
    probs, value = actor_critic_forward(state, params)
    jax.block_until_ready((probs, value))
    ref_probs, ref_value = _reference_forward(state, params)
    assert probs.shape == (batch, action_dim)
    assert value.shape == (batch,)
    assert jnp.allclose(probs, ref_probs, atol=1e-3, rtol=1e-3)
    assert jnp.allclose(value, ref_value, atol=1e-3, rtol=1e-3)
    assert jnp.allclose(jnp.sum(probs, axis=-1), 1.0, atol=1e-3)

    # case 2: single 1-D state (module unsqueezes to batch of 1)
    p1, v1 = actor_critic_forward(state[0], params)
    jax.block_until_ready((p1, v1))
    assert p1.shape == (1, action_dim) and v1.shape == (1,)
    assert jnp.allclose(p1, ref_probs[:1], atol=1e-3, rtol=1e-3)
    assert jnp.allclose(v1, ref_value[:1], atol=1e-3, rtol=1e-3)

    # case 3: batch large enough to exercise batch padding + a 2-step parallel grid
    batch2 = 600
    state2 = jax.random.normal(k_state2, (batch2, state_dim), dtype=jnp.float32)
    probs2, value2 = actor_critic_forward(state2, params)
    jax.block_until_ready((probs2, value2))
    ref_probs2, ref_value2 = _reference_forward(state2, params)
    assert probs2.shape == (batch2, action_dim)
    assert value2.shape == (batch2,)
    assert jnp.allclose(probs2, ref_probs2, atol=1e-3, rtol=1e-3)
    assert jnp.allclose(value2, ref_value2, atol=1e-3, rtol=1e-3)

    print("KERNEL_OK")
</pallas_src>

<mosaic_0001>
module attributes {stable_mosaic.version = 11 : i64} {
  func.func @_actor_critic_kernel(%arg0: i32, %arg1: memref<8x16xf32, #tpu.memory_space<vmem>>, %arg2: memref<16x128xf32, #tpu.memory_space<vmem>>, %arg3: memref<1x128xf32, #tpu.memory_space<vmem>>, %arg4: memref<128x256xf32, #tpu.memory_space<vmem>>, %arg5: memref<1x256xf32, #tpu.memory_space<vmem>>, %arg6: memref<128x128xf32, #tpu.memory_space<vmem>>, %arg7: memref<1x128xf32, #tpu.memory_space<vmem>>, %arg8: memref<1x128xf32, #tpu.memory_space<vmem>>, %arg9: memref<1x1xf32, #tpu.memory_space<vmem>>, %arg10: memref<8x128xf32, #tpu.memory_space<vmem>>) attributes {dimension_semantics = [#tpu.dimension_semantics<parallel>], iteration_bounds = array<i64: 1>, scalar_prefetch = 0 : i64, scratch_operands = 0 : i64, tpu.core_type = #tpu.core_type<tc>, window_params = [{transform_indices = @transform_0, window_bounds = array<i64: 8, 16>}, {pipeline_mode = #tpu.pipeline_mode<synchronous>, transform_indices = @transform_1, window_bounds = array<i64: 16, 128>}, {pipeline_mode = #tpu.pipeline_mode<synchronous>, transform_indices = @transform_2, window_bounds = array<i64: 1, 128>}, {pipeline_mode = #tpu.pipeline_mode<synchronous>, transform_indices = @transform_3, window_bounds = array<i64: 128, 256>}, {pipeline_mode = #tpu.pipeline_mode<synchronous>, transform_indices = @transform_4, window_bounds = array<i64: 1, 256>}, {pipeline_mode = #tpu.pipeline_mode<synchronous>, transform_indices = @transform_5, window_bounds = array<i64: 128, 128>}, {pipeline_mode = #tpu.pipeline_mode<synchronous>, transform_indices = @transform_6, window_bounds = array<i64: 1, 128>}, {pipeline_mode = #tpu.pipeline_mode<synchronous>, transform_indices = @transform_7, window_bounds = array<i64: 1, 128>}, {pipeline_mode = #tpu.pipeline_mode<synchronous>, transform_indices = @transform_8, window_bounds = array<i64: 1, 1>}, {transform_indices = @transform_9, window_bounds = array<i64: 8, 128>}]} {
    %c0 = arith.constant 0 : index
    %c0_0 = arith.constant 0 : index
    %0 = vector.load %arg1[%c0, %c0_0] : memref<8x16xf32, #tpu.memory_space<vmem>>, vector<8x16xf32>
    %c0_1 = arith.constant 0 : index
    %c0_2 = arith.constant 0 : index
    %1 = vector.load %arg2[%c0_1, %c0_2] : memref<16x128xf32, #tpu.memory_space<vmem>>, vector<16x128xf32>
    %cst = arith.constant dense<0.000000e+00> : vector<8x128xf32>
    %2 = tpu.matmul %0, %1, %cst {dimension_numbers = #tpu.dot_dimension_numbers<[1], [0], [0], [1], [0, 0, 1, 1], [], []>} : vector<8x16xf32>, vector<16x128xf32>, vector<8x128xf32> -> vector<8x128xf32>
    %c0_3 = arith.constant 0 : index
    %c0_4 = arith.constant 0 : index
    %3 = vector.load %arg3[%c0_3, %c0_4] : memref<1x128xf32, #tpu.memory_space<vmem>>, vector<1x128xf32>
    %4 = vector.broadcast %3 : vector<1x128xf32> to vector<8x128xf32>
    %5 = arith.addf %2, %4 : vector<8x128xf32>
    %cst_5 = arith.constant 0.000000e+00 : f32
    %6 = vector.broadcast %cst_5 : f32 to vector<8x128xf32>
    %7 = arith.maximumf %5, %6 : vector<8x128xf32>
    %c0_6 = arith.constant 0 : index
    %c0_7 = arith.constant 0 : index
    %8 = vector.load %arg4[%c0_6, %c0_7] : memref<128x256xf32, #tpu.memory_space<vmem>>, vector<128x256xf32>
    %cst_8 = arith.constant dense<0.000000e+00> : vector<8x256xf32>
    %9 = tpu.matmul %7, %8, %cst_8 {dimension_numbers = #tpu.dot_dimension_numbers<[1], [0], [0], [1], [0, 0, 1, 1], [], []>} : vector<8x128xf32>, vector<128x256xf32>, vector<8x256xf32> -> vector<8x256xf32>
    %c0_9 = arith.constant 0 : index
    %c0_10 = arith.constant 0 : index
    %10 = vector.load %arg5[%c0_9, %c0_10] : memref<1x256xf32, #tpu.memory_space<vmem>>, vector<1x256xf32>
    %11 = vector.broadcast %10 : vector<1x256xf32> to vector<8x256xf32>
    %12 = arith.addf %9, %11 : vector<8x256xf32>
    %cst_11 = arith.constant 0.000000e+00 : f32
    %13 = vector.broadcast %cst_11 : f32 to vector<8x256xf32>
    %14 = arith.maximumf %12, %13 : vector<8x256xf32>
    %15 = vector.extract_strided_slice %14 {offsets = [0, 0], sizes = [8, 128], strides = [1, 1]} : vector<8x256xf32> to vector<8x128xf32>
    %16 = vector.extract_strided_slice %14 {offsets = [0, 128], sizes = [8, 128], strides = [1, 1]} : vector<8x256xf32> to vector<8x128xf32>
    %c0_12 = arith.constant 0 : index
    %c0_13 = arith.constant 0 : index
    %17 = vector.load %arg6[%c0_12, %c0_13] : memref<128x128xf32, #tpu.memory_space<vmem>>, vector<128x128xf32>
    %cst_14 = arith.constant dense<0.000000e+00> : vector<8x128xf32>
    %18 = tpu.matmul %15, %17, %cst_14 {dimension_numbers = #tpu.dot_dimension_numbers<[1], [0], [0], [1], [0, 0, 1, 1], [], []>} : vector<8x128xf32>, vector<128x128xf32>, vector<8x128xf32> -> vector<8x128xf32>
    %c0_15 = arith.constant 0 : index
    %c0_16 = arith.constant 0 : index
    %19 = vector.load %arg7[%c0_15, %c0_16] : memref<1x128xf32, #tpu.memory_space<vmem>>, vector<1x128xf32>
    %20 = vector.broadcast %19 : vector<1x128xf32> to vector<8x128xf32>
    %21 = arith.addf %18, %20 : vector<8x128xf32>
    %cst_17 = arith.constant dense<0xFF800000> : vector<8xf32>
    %22 = vector.multi_reduction <maximumf>, %21, %cst_17 [1] : vector<8x128xf32> to vector<8xf32>
    %23 = vector.shape_cast %22 : vector<8xf32> to vector<8x1xf32>
    %24 = vector.broadcast %23 : vector<8x1xf32> to vector<8x128xf32>
    %25 = arith.subf %21, %24 : vector<8x128xf32>
    %26 = math.exp %25 : vector<8x128xf32>
    %cst_18 = arith.constant dense<0.000000e+00> : vector<8xf32>
    %27 = vector.multi_reduction <add>, %26, %cst_18 [1] : vector<8x128xf32> to vector<8xf32>
    %28 = vector.shape_cast %27 : vector<8xf32> to vector<8x1xf32>
    %cst_19 = arith.constant 1.000000e+00 : f32
    %29 = vector.broadcast %cst_19 : f32 to vector<8x1xf32>
    %30 = arith.divf %29, %28 : vector<8x1xf32>
    %31 = vector.broadcast %30 : vector<8x1xf32> to vector<8x128xf32>
    %32 = arith.mulf %26, %31 : vector<8x128xf32>
    %c0_20 = arith.constant 0 : index
    %c0_21 = arith.constant 0 : index
    %33 = vector.load %arg8[%c0_20, %c0_21] : memref<1x128xf32, #tpu.memory_space<vmem>>, vector<1x128xf32>
    %34 = vector.broadcast %33 : vector<1x128xf32> to vector<8x128xf32>
    %35 = arith.mulf %16, %34 : vector<8x128xf32>
    %cst_22 = arith.constant dense<0.000000e+00> : vector<8xf32>
    %36 = vector.multi_reduction <add>, %35, %cst_22 [1] : vector<8x128xf32> to vector<8xf32>
    %37 = vector.shape_cast %36 : vector<8xf32> to vector<8x1xf32>
    %c0_23 = arith.constant 0 : index
    %c0_24 = arith.constant 0 : index
    %38 = vector.load %arg9[%c0_23, %c0_24] : memref<1x1xf32, #tpu.memory_space<vmem>>, vector<1x1xf32>
    %39 = vector.broadcast %38 : vector<1x1xf32> to vector<8x1xf32>
    %40 = arith.addf %37, %39 : vector<8x1xf32>
    %41 = tpu.iota {dimensions = array<i32: 1>} : vector<8x128xi32>
    %c8_i32 = arith.constant 8 : i32
    %42 = vector.broadcast %c8_i32 : i32 to vector<8x128xi32>
    %43 = arith.cmpi eq, %41, %42 : vector<8x128xi32>
    %44 = vector.shape_cast %40 : vector<8x1xf32> to vector<8x1xf32>
    %45 = vector.broadcast %44 : vector<8x1xf32> to vector<8x128xf32>
    %46 = arith.select %43, %45, %32 : vector<8x128xi1>, vector<8x128xf32>
    %c0_25 = arith.constant 0 : index
    %c0_26 = arith.constant 0 : index
    %47 = vector.load %arg10[%c0_25, %c0_26] : memref<8x128xf32, #tpu.memory_space<vmem>>, vector<8x128xf32>
    tpu.vector_store %arg10[%c0_25, %c0_26], %46 {strides = array<i32>} : memref<8x128xf32, #tpu.memory_space<vmem>>, vector<8x128xf32>,
    return
  }
  func.func @transform_0(%arg0: i32) -> (i32, i32) {
    %c0_i32 = arith.constant 0 : i32
    %c0_i32_0 = arith.constant 0 : i32
    return %arg0, %c0_i32 : i32, i32
  }
  func.func @transform_1(%arg0: i32) -> (i32, i32) {
    %c0_i32 = arith.constant 0 : i32
    %c0_i32_0 = arith.constant 0 : i32
    %c0_i32_1 = arith.constant 0 : i32
    return %c0_i32, %c0_i32_0 : i32, i32
  }
  func.func @transform_2(%arg0: i32) -> (i32, i32) {
    %c0_i32 = arith.constant 0 : i32
    %c0_i32_0 = arith.constant 0 : i32
    %c0_i32_1 = arith.constant 0 : i32
    return %c0_i32, %c0_i32_0 : i32, i32
  }
  func.func @transform_3(%arg0: i32) -> (i32, i32) {
    %c0_i32 = arith.constant 0 : i32
    %c0_i32_0 = arith.constant 0 : i32
    %c0_i32_1 = arith.constant 0 : i32
    return %c0_i32, %c0_i32_0 : i32, i32
  }
  func.func @transform_4(%arg0: i32) -> (i32, i32) {
    %c0_i32 = arith.constant 0 : i32
    %c0_i32_0 = arith.constant 0 : i32
    %c0_i32_1 = arith.constant 0 : i32
    return %c0_i32, %c0_i32_0 : i32, i32
  }
  func.func @transform_5(%arg0: i32) -> (i32, i32) {
    %c0_i32 = arith.constant 0 : i32
    %c0_i32_0 = arith.constant 0 : i32
    %c0_i32_1 = arith.constant 0 : i32
    return %c0_i32, %c0_i32_0 : i32, i32
  }
  func.func @transform_6(%arg0: i32) -> (i32, i32) {
    %c0_i32 = arith.constant 0 : i32
    %c0_i32_0 = arith.constant 0 : i32
    %c0_i32_1 = arith.constant 0 : i32
    return %c0_i32, %c0_i32_0 : i32, i32
  }
  func.func @transform_7(%arg0: i32) -> (i32, i32) {
    %c0_i32 = arith.constant 0 : i32
    %c0_i32_0 = arith.constant 0 : i32
    %c0_i32_1 = arith.constant 0 : i32
    return %c0_i32, %c0_i32_0 : i32, i32
  }
  func.func @transform_8(%arg0: i32) -> (i32, i32) {
    %c0_i32 = arith.constant 0 : i32
    %c0_i32_0 = arith.constant 0 : i32
    %c0_i32_1 = arith.constant 0 : i32
    return %c0_i32, %c0_i32_0 : i32, i32
  }
  func.func @transform_9(%arg0: i32) -> (i32, i32) {
    %c0_i32 = arith.constant 0 : i32
    %c0_i32_0 = arith.constant 0 : i32
    return %arg0, %c0_i32 : i32, i32
  }
}

</mosaic_0001>

<llo_original>
// kernel: actor_critic_forward.1
$region0: #{actor_critic_forward.1}
  #allocation0 [shape = 'u32[]', space=smem, size = 0x4, offset = 0x4, fixed_abs, tag = 'smem constant byte address 0x4 - core index']
  #allocation1 [shape = 'u32[144,128]{1,0:T(1,128)}', space=vmem, size = 0x12000, scoped, tag = 'internal scratch']
  #allocation2 [shape = 'f32[1,1]{1,0:T(1,128)S(1)}', space=vmem, size = 0x200, scoped, tag = 'scoped memory for actor_critic_forward.1']
  %s0 = inlined_call_operand.vmem [shape: f32[8,16], index: 0, kind: input, shape index: {}]
  %s1 = inlined_call_operand.vmem [shape: f32[16,128], index: 1, kind: input, shape index: {}]
  %s2 = inlined_call_operand.vmem [shape: f32[1,128], index: 2, kind: input, shape index: {}]
  %s3 = inlined_call_operand.vmem [shape: f32[128,256], index: 3, kind: input, shape index: {}]
  %s4 = inlined_call_operand.vmem [shape: f32[1,256], index: 4, kind: input, shape index: {}]
  %s5 = inlined_call_operand.vmem [shape: f32[128,128], index: 5, kind: input, shape index: {}]
  %s6 = inlined_call_operand.vmem [shape: f32[1,128], index: 6, kind: input, shape index: {}]
  %s7 = inlined_call_operand.vmem [shape: f32[1,128], index: 7, kind: input, shape index: {}]
  %s8 = inlined_call_operand.<no memory space> [shape: f32[1,1], index: 8, kind: input, shape index: {}]
  %s9 = inlined_call_operand.vmem [shape: f32[8,128], index: 9, kind: output, shape index: {}]
  %s10 = sld [smem:[#allocation0]]
  $region46: #{actor_critic_forward.1} parent=0
    _
  %s12 = ssub.s32 1, %s10
  %s13 = scalar_select 0, %s12, %s10
  %v14 = vstv %s8
  %15 = vst [vmem:[#allocation2] sm:$0x1] %v14
  // Predicated region
  $region2: #{actor_critic_forward.1} parent=0 // pred_check
    _
  $region3: #{actor_critic_forward.1} parent=0 // pred_check_branch
    %17 = sbr.rel (0) target = $region5
  $region4: #{actor_critic_forward.1} parent=0 // pred_region
    _
  $region5: #{actor_critic_forward.1} parent=0 // pred_fallthru
    _
  // Predicated region
  $region6: #{actor_critic_forward.1} parent=0 // pred_check
    _
  $region7: #{actor_critic_forward.1} parent=0 // pred_check_branch
    %19 = sbr.rel (0) target = $region9
  $region8: #{actor_critic_forward.1} parent=0 // pred_region
    _
  $region9: #{actor_critic_forward.1} parent=0 // pred_fallthru
    _
  // Predicated region
  $region10: #{actor_critic_forward.1} parent=0 // pred_check
    _
  $region11: #{actor_critic_forward.1} parent=0 // pred_check_branch
    %21 = sbr.rel (0) target = $region13
  $region12: #{actor_critic_forward.1} parent=0 // pred_region
    _
  $region13: #{actor_critic_forward.1} parent=0 // pred_fallthru
    _
  // Predicated region
  $region14: #{actor_critic_forward.1} parent=0 // pred_check
    _
  $region15: #{actor_critic_forward.1} parent=0 // pred_check_branch
    %23 = sbr.rel (0) target = $region17
  $region16: #{actor_critic_forward.1} parent=0 // pred_region
    _
  $region17: #{actor_critic_forward.1} parent=0 // pred_fallthru
    _
  // Predicated region
  $region18: #{actor_critic_forward.1} parent=0 // pred_check
    _
  $region19: #{actor_critic_forward.1} parent=0 // pred_check_branch
    %25 = sbr.rel (0) target = $region21
  $region20: #{actor_critic_forward.1} parent=0 // pred_region
    _
  $region21: #{actor_critic_forward.1} parent=0 // pred_fallthru
    _
  // Predicated region
  $region22: #{actor_critic_forward.1} parent=0 // pred_check
    _
  $region23: #{actor_critic_forward.1} parent=0 // pred_check_branch
    %27 = sbr.rel (0) target = $region25
  $region24: #{actor_critic_forward.1} parent=0 // pred_region
    _
  $region25: #{actor_critic_forward.1} parent=0 // pred_fallthru
    _
  // Predicated region
  $region26: #{actor_critic_forward.1} parent=0 // pred_check
    _
  $region27: #{actor_critic_forward.1} parent=0 // pred_check_branch
    %29 = sbr.rel (0) target = $region29
  $region28: #{actor_critic_forward.1} parent=0 // pred_region
    _
  $region29: #{actor_critic_forward.1} parent=0 // pred_fallthru
    _
  // Predicated region
  $region30: #{actor_critic_forward.1} parent=0 // pred_check
    _
  $region31: #{actor_critic_forward.1} parent=0 // pred_check_branch
    %31 = sbr.rel (0) target = $region33
  $region32: #{actor_critic_forward.1} parent=0 // pred_region
    _
  $region33: #{actor_critic_forward.1} parent=0 // pred_fallthru
    _
  // Predicated region
  $region34: #{actor_critic_forward.1} parent=0 // pred_check
    _
  $region35: #{actor_critic_forward.1} parent=0 // pred_check_branch
    %33 = sbr.rel (0) target = $region37
  $region36: #{actor_critic_forward.1} parent=0 // pred_region
    _
  $region37: #{actor_critic_forward.1} parent=0 // pred_fallthru
    _
  %v34 = vld [vmem:[%s0] sm:$0xff]
  %v35 = vld [vmem:[%s1] sm:$0xff]
  %v36 = vld [vmem:[%s1 + $0x8] sm:$0xff]
  %v37 = vld [vmem:[%s2] sm:$0x1]
  %v39 = vlaneseq
  %v40 = vshrl.u32 %v39, 7
  %v41 = vsub.s32 0, %v40
  %v42 = vrot.slane %v37, %v41
  %vm44 = vcmask 130048
  %v46 = vsel %vm44, %v34, 0
  %48 = vmatprep.subr.mxu0 0.0
  %49 = vmatpush1.msra.mxu0 %v35
  %50 = vmatprep.subr.mxu0 0.0
  %51 = vmatpush1.msra.mxu0 %v36
  %52 = vmatprep.subr.mxu0 0.0
  %53 = vmatpush1.msra.mxu0 0.0
  %54 = vmatprep.subr.mxu0 0.0
  %55 = vmatpush1.msra.mxu0 0.0
  %56 = vmatprep.subr.mxu0 0.0
  %57 = vmatpush1.msra.mxu0 0.0
  %58 = vmatprep.subr.mxu0 0.0
  %59 = vmatpush1.msra.mxu0 0.0
  %60 = vmatprep.subr.mxu0 0.0
  %61 = vmatpush1.msra.mxu0 0.0
  %62 = vmatprep.subr.mxu0 0.0
  %63 = vmatpush1.msra.mxu0 0.0
  %64 = vmatprep.subr.mxu0 0.0
  %65 = vmatpush1.msra.mxu0 0.0
  %66 = vmatprep.subr.mxu0 0.0
  %67 = vmatpush1.msra.mxu0 0.0
  %68 = vmatprep.subr.mxu0 0.0
  %69 = vmatpush1.msra.mxu0 0.0
  %70 = vmatprep.subr.mxu0 0.0
  %71 = vmatpush1.msra.mxu0 0.0
  %72 = vmatprep.subr.mxu0 0.0
  %73 = vmatpush1.msra.mxu0 0.0
  %74 = vmatprep.subr.mxu0 0.0
  %75 = vmatpush1.msra.mxu0 0.0
  %76 = vmatprep.subr.mxu0 0.0
  %77 = vmatpush1.msra.mxu0 0.0
  %78 = vmatprep.subr.mxu0 0.0
  %79 = vmatpush1.msra.mxu0 0.0
  %80 = vmatprep.subr.mxu0 0.0
  %81 = vmatpush1.msra.mxu0 0.0
  %82 = vmatprep.subr.mxu0 0.0
  %83 = vmatpush1.msra.mxu0 0.0
  %84 = vmatprep.subr.mxu0 0.0
  %85 = vmatpush1.msra.mxu0 0.0
  %86 = vmatprep.subr.mxu0 0.0
  %87 = vmatpush1.msra.mxu0 0.0
  %88 = vmatprep.subr.mxu0 0.0
  %89 = vmatpush1.msra.mxu0 0.0
  %90 = vmatprep.subr.mxu0 0.0
  %91 = vmatpush1.msra.mxu0 0.0
  %92 = vmatprep.subr.mxu0 0.0
  %93 = vmatpush1.msra.mxu0 0.0
  %94 = vmatprep.subr.mxu0 0.0
  %95 = vmatpush1.msra.mxu0 0.0
  %96 = vmatprep.subr.mxu0 0.0
  %97 = vmatpush1.msra.mxu0 0.0
  %98 = vmatprep.subr.mxu0 0.0
  %99 = vmatpush1.msra.mxu0 0.0
  %100 = vmatprep.subr.mxu0 0.0
  %101 = vmatpush1.msra.mxu0 0.0
  %102 = vmatprep.subr.mxu0 0.0
  %103 = vmatpush1.msra.mxu0 0.0
  %104 = vmatprep.subr.mxu0 0.0
  %105 = vmatpush1.msra.mxu0 0.0
  %106 = vmatprep.subr.mxu0 0.0
  %107 = vmatpush1.msra.mxu0 0.0
  %108 = vmatprep.subr.mxu0 0.0
  %109 = vmatpush1.msra.mxu0 0.0
  %110 = vmatprep.subr.mxu0 0.0
  %111 = vmatpush1.msra.mxu0 0.0
  %112 = vmatprep.mubr.f32.mxu0 0.0
  %113 = vmatmul.mubr.f32.gmra.mrb[0].mxu0 %v46
  %v114 = vpop.f32.mrb[0].mxu0
  %v115 = vadd.f32 %v42, %v114
  %v116 = vpop.f32.mrb[0].mxu0
  %117 = vdwg.mxu0
  %v118 = vmax.f32 %v115, 0.0
  %v119 = vld [vmem:[%s3] sm:$0xff]
  %v120 = vld [vmem:[%s3 + $0x8] sm:$0xff]
  %v121 = vld [vmem:[%s3 + $0x10] sm:$0xff]
  %v122 = vld [vmem:[%s3 + $0x18] sm:$0xff]
  %v123 = vld [vmem:[%s3 + $0x20] sm:$0xff]
  %v124 = vld [vmem:[%s3 + $0x28] sm:$0xff]
  %v125 = vld [vmem:[%s3 + $0x30] sm:$0xff]
  %v126 = vld [vmem:[%s3 + $0x38] sm:$0xff]
  %v127 = vld [vmem:[%s3 + $0x40] sm:$0xff]
  %v128 = vld [vmem:[%s3 + $0x48] sm:$0xff]
  %v129 = vld [vmem:[%s3 + $0x50] sm:$0xff]
  %v130 = vld [vmem:[%s3 + $0x58] sm:$0xff]
  %v131 = vld [vmem:[%s3 + $0x60] sm:$0xff]
  %v132 = vld [vmem:[%s3 + $0x68] sm:$0xff]
  %v133 = vld [vmem:[%s3 + $0x70] sm:$0xff]
  %v134 = vld [vmem:[%s3 + $0x78] sm:$0xff]
  %v135 = vld [vmem:[%s3 + $0x80] sm:$0xff]
  %v136 = vld [vmem:[%s3 + $0x88] sm:$0xff]
  %v137 = vld [vmem:[%s3 + $0x90] sm:$0xff]
  %v138 = vld [vmem:[%s3 + $0x98] sm:$0xff]
  %v139 = vld [vmem:[%s3 + $0xa0] sm:$0xff]
  %v140 = vld [vmem:[%s3 + $0xa8] sm:$0xff]
  %v141 = vld [vmem:[%s3 + $0xb0] sm:$0xff]
  %v142 = vld [vmem:[%s3 + $0xb8] sm:$0xff]
  %v143 = vld [vmem:[%s3 + $0xc0] sm:$0xff]
  %v144 = vld [vmem:[%s3 + $0xc8] sm:$0xff]
  %v145 = vld [vmem:[%s3 + $0xd0] sm:$0xff]
  %v146 = vld [vmem:[%s3 + $0xd8] sm:$0xff]
  %v147 = vld [vmem:[%s3 + $0xe0] sm:$0xff]
  %v148 = vld [vmem:[%s3 + $0xe8] sm:$0xff]
  %v149 = vld [vmem:[%s3 + $0xf0] sm:$0xff]
  %v150 = vld [vmem:[%s3 + $0xf8] sm:$0xff]
  %v151 = vld [vmem:[%s4] sm:$0x3]
  %v153 = vlaneseq
  %v154 = vshrl.u32 %v153, 7
  %v155 = vsub.s32 0, %v154
  %v156 = vrot.slane %v151, %v155
  %v157 = vlaneseq
  %v158 = vshrl.u32 %v157, 7
  %v159 = vsub.s32 1, %v158
  %v160 = vrot.slane %v151, %v159
  %163 = vmatprep.subr.mxu0 %v120
  %164 = vmatpush1.msra.mxu0 %v119
  %165 = vmatprep.subr.mxu0 %v122
  %166 = vmatpush1.msra.mxu0 %v121
  %167 = vmatprep.subr.mxu0 %v124
  %168 = vmatpush1.msra.mxu0 %v123
  %169 = vmatprep.subr.mxu0 %v126
  %170 = vmatpush1.msra.mxu0 %v125
  %171 = vmatprep.subr.mxu0 %v128
  %172 = vmatpush1.msra.mxu0 %v127
  %173 = vmatprep.subr.mxu0 %v130
  %174 = vmatpush1.msra.mxu0 %v129
  %175 = vmatprep.subr.mxu0 %v132
  %176 = vmatpush1.msra.mxu0 %v131
  %177 = vmatprep.subr.mxu0 %v134
  %178 = vmatpush1.msra.mxu0 %v133
  %179 = vmatprep.subr.mxu0 %v136
  %180 = vmatpush1.msra.mxu0 %v135
  %181 = vmatprep.subr.mxu0 %v138
  %182 = vmatpush1.msra.mxu0 %v137
  %183 = vmatprep.subr.mxu0 %v140
  %184 = vmatpush1.msra.mxu0 %v139
  %185 = vmatprep.subr.mxu0 %v142
  %186 = vmatpush1.msra.mxu0 %v141
  %187 = vmatprep.subr.mxu0 %v144
  %188 = vmatpush1.msra.mxu0 %v143
  %189 = vmatprep.subr.mxu0 %v146
  %190 = vmatpush1.msra.mxu0 %v145
  %191 = vmatprep.subr.mxu0 %v148
  %192 = vmatpush1.msra.mxu0 %v147
  %193 = vmatprep.subr.mxu0 %v150
  %194 = vmatpush1.msra.mxu0 %v149
  %195 = vmatprep.subr.mxu0 0.0
  %196 = vmatpush1.msra.mxu0 0.0
  %197 = vmatprep.subr.mxu0 0.0
  %198 = vmatpush1.msra.mxu0 0.0
  %199 = vmatprep.subr.mxu0 0.0
  %200 = vmatpush1.msra.mxu0 0.0
  %201 = vmatprep.subr.mxu0 0.0
  %202 = vmatpush1.msra.mxu0 0.0
  %203 = vmatprep.subr.mxu0 0.0
  %204 = vmatpush1.msra.mxu0 0.0
  %205 = vmatprep.subr.mxu0 0.0
  %206 = vmatpush1.msra.mxu0 0.0
  %207 = vmatprep.subr.mxu0 0.0
  %208 = vmatpush1.msra.mxu0 0.0
  %209 = vmatprep.subr.mxu0 0.0
  %210 = vmatpush1.msra.mxu0 0.0
  %211 = vmatprep.subr.mxu0 0.0
  %212 = vmatpush1.msra.mxu0 0.0
  %213 = vmatprep.subr.mxu0 0.0
  %214 = vmatpush1.msra.mxu0 0.0
  %215 = vmatprep.subr.mxu0 0.0
  %216 = vmatpush1.msra.mxu0 0.0
  %217 = vmatprep.subr.mxu0 0.0
  %218 = vmatpush1.msra.mxu0 0.0
  %219 = vmatprep.subr.mxu0 0.0
  %220 = vmatpush1.msra.mxu0 0.0
  %221 = vmatprep.subr.mxu0 0.0
  %222 = vmatpush1.msra.mxu0 0.0
  %223 = vmatprep.subr.mxu0 0.0
  %224 = vmatpush1.msra.mxu0 0.0
  %225 = vmatprep.subr.mxu0 0.0
  %226 = vmatpush1.msra.mxu0 0.0
  %227 = vmatprep.mubr.f32.mxu0 0.0
  %228 = vmatmul.mubr.f32.gmra.mrb[0].mxu0 %v118
  %v229 = vpop.f32.mrb[0].mxu0
  %v230 = vadd.f32 %v156, %v229
  %v231 = vpop.f32.mrb[0].mxu0
  %v232 = vadd.f32 %v160, %v231
  %233 = vdwg.mxu0
  %v234 = vmax.f32 %v230, 0.0
  %v235 = vmax.f32 %v232, 0.0
  %v236 = vld [vmem:[%s5] sm:$0xff]
  %v237 = vld [vmem:[%s5 + $0x8] sm:$0xff]
  %v238 = vld [vmem:[%s5 + $0x10] sm:$0xff]
  %v239 = vld [vmem:[%s5 + $0x18] sm:$0xff]
  %v240 = vld [vmem:[%s5 + $0x20] sm:$0xff]
  %v241 = vld [vmem:[%s5 + $0x28] sm:$0xff]
  %v242 = vld [vmem:[%s5 + $0x30] sm:$0xff]
  %v243 = vld [vmem:[%s5 + $0x38] sm:$0xff]
  %v244 = vld [vmem:[%s5 + $0x40] sm:$0xff]
  %v245 = vld [vmem:[%s5 + $0x48] sm:$0xff]
  %v246 = vld [vmem:[%s5 + $0x50] sm:$0xff]
  %v247 = vld [vmem:[%s5 + $0x58] sm:$0xff]
  %v248 = vld [vmem:[%s5 + $0x60] sm:$0xff]
  %v249 = vld [vmem:[%s5 + $0x68] sm:$0xff]
  %v250 = vld [vmem:[%s5 + $0x70] sm:$0xff]
  %v251 = vld [vmem:[%s5 + $0x78] sm:$0xff]
  %v252 = vld [vmem:[%s6] sm:$0x1]
  %v254 = vlaneseq
  %v255 = vshrl.u32 %v254, 7
  %v256 = vsub.s32 0, %v255
  %v257 = vrot.slane %v252, %v256
  %259 = vmatprep.subr.mxu0 0.0
  %260 = vmatpush1.msra.mxu0 %v236
  %261 = vmatprep.subr.mxu0 0.0
  %262 = vmatpush1.msra.mxu0 %v237
  %263 = vmatprep.subr.mxu0 0.0
  %264 = vmatpush1.msra.mxu0 %v238
  %265 = vmatprep.subr.mxu0 0.0
  %266 = vmatpush1.msra.mxu0 %v239
  %267 = vmatprep.subr.mxu0 0.0
  %268 = vmatpush1.msra.mxu0 %v240
  %269 = vmatprep.subr.mxu0 0.0
  %270 = vmatpush1.msra.mxu0 %v241
  %271 = vmatprep.subr.mxu0 0.0
  %272 = vmatpush1.msra.mxu0 %v242
  %273 = vmatprep.subr.mxu0 0.0
  %274 = vmatpush1.msra.mxu0 %v243
  %275 = vmatprep.subr.mxu0 0.0
  %276 = vmatpush1.msra.mxu0 %v244
  %277 = vmatprep.subr.mxu0 0.0
  %278 = vmatpush1.msra.mxu0 %v245
  %279 = vmatprep.subr.mxu0 0.0
  %280 = vmatpush1.msra.mxu0 %v246
  %281 = vmatprep.subr.mxu0 0.0
  %282 = vmatpush1.msra.mxu0 %v247
  %283 = vmatprep.subr.mxu0 0.0
  %284 = vmatpush1.msra.mxu0 %v248
  %285 = vmatprep.subr.mxu0 0.0
  %286 = vmatpush1.msra.mxu0 %v249
  %287 = vmatprep.subr.mxu0 0.0
  %288 = vmatpush1.msra.mxu0 %v250
  %289 = vmatprep.subr.mxu0 0.0
  %290 = vmatpush1.msra.mxu0 %v251
  %291 = vmatprep.subr.mxu0 0.0
  %292 = vmatpush1.msra.mxu0 0.0
  %293 = vmatprep.subr.mxu0 0.0
  %294 = vmatpush1.msra.mxu0 0.0
  %295 = vmatprep.subr.mxu0 0.0
  %296 = vmatpush1.msra.mxu0 0.0
  %297 = vmatprep.subr.mxu0 0.0
  %298 = vmatpush1.msra.mxu0 0.0
  %299 = vmatprep.subr.mxu0 0.0
  %300 = vmatpush1.msra.mxu0 0.0
  %301 = vmatprep.subr.mxu0 0.0
  %302 = vmatpush1.msra.mxu0 0.0
  %303 = vmatprep.subr.mxu0 0.0
  %304 = vmatpush1.msra.mxu0 0.0
  %305 = vmatprep.subr.mxu0 0.0
  %306 = vmatpush1.msra.mxu0 0.0
  %307 = vmatprep.subr.mxu0 0.0
  %308 = vmatpush1.msra.mxu0 0.0
  %309 = vmatprep.subr.mxu0 0.0
  %310 = vmatpush1.msra.mxu0 0.0
  %311 = vmatprep.subr.mxu0 0.0
  %312 = vmatpush1.msra.mxu0 0.0
  %313 = vmatprep.subr.mxu0 0.0
  %314 = vmatpush1.msra.mxu0 0.0
  %315 = vmatprep.subr.mxu0 0.0
  %316 = vmatpush1.msra.mxu0 0.0
  %317 = vmatprep.subr.mxu0 0.0
  %318 = vmatpush1.msra.mxu0 0.0
  %319 = vmatprep.subr.mxu0 0.0
  %320 = vmatpush1.msra.mxu0 0.0
  %321 = vmatprep.subr.mxu0 0.0
  %322 = vmatpush1.msra.mxu0 0.0
  %323 = vmatprep.mubr.f32.mxu0 0.0
  %324 = vmatmul.mubr.f32.gmra.mrb[0].mxu0 %v234
  %v325 = vpop.f32.mrb[0].mxu0
  %v326 = vadd.f32 %v257, %v325
  %v327 = vpop.f32.mrb[0].mxu0
  %328 = vdwg.mxu0
  %329 = vmax.xlane.f32.xlu0 %v326
  %v330 = vpop.xlane.xlu0 %329
  %v331 = vsub.f32 %v326, %v330
  %v332 = vmul.f32 %v331, 1.442695
  %v333 = vpow.pop %v332
  %334 = vadd.xlane.f32.xlu0 %v333
  %v335 = vpop.xlane.xlu0 %334
  %v336 = vrcp.pop %v335
  %v337 = vmul.f32 1.0, %v336
  %v338 = vmul.f32 %v333, %v337
  %v339 = vld [vmem:[%s7] sm:$0x1]
  %v341 = vlaneseq
  %v342 = vshrl.u32 %v341, 7
  %v343 = vsub.s32 0, %v342
  %v344 = vrot.slane %v339, %v343
  %v346 = vmul.f32 %v235, %v344
  %347 = vadd.xlane.f32.xlu0 %v346
  %v348 = vpop.xlane.xlu0 %347
  %v349 = vld [vmem:[#allocation2] sm:$0x1]
  %v351 = vlaneseq
  %v352 = vshrl.u32 %v351, 7
  %v353 = vsub.s32 0, %v352
  %v354 = vrot.slane %v349, %v353
  %v356 = vadd.f32 %v348, %v354
  %v357 = vlaneseq
  %v358 = vand.u32 %v357, 127
  %vm359 = vcmp.eq.s32.totalorder %v358, 8
  %361 = vset.pattern.permute.xlu0 0
  %362 = vperm.xlu0 %361, %v356
  %v363 = vpop.permute.xlu0 %362
  %v365 = vsel %vm359, %v363, %v338
  %366 = vst [vmem:[%s9] sm:$0xff] %v365
  // Predicated region
  $region38: #{actor_critic_forward.1} parent=0 // pred_check
    _
  $region39: #{actor_critic_forward.1} parent=0 // pred_check_branch
    %368 = sbr.rel (0) target = $region41
  $region40: #{actor_critic_forward.1} parent=0 // pred_region
    _
  $region41: #{actor_critic_forward.1} parent=0 // pred_fallthru
    _
  // Predicated region
  $region42: #{actor_critic_forward.1} parent=0 // pred_check
    _
  $region43: #{actor_critic_forward.1} parent=0 // pred_check_branch
    %370 = sbr.rel (0) target = $region45
  $region44: #{actor_critic_forward.1} parent=0 // pred_region
    _
  $region45: #{actor_critic_forward.1} parent=0 // pred_fallthru
    _

</llo_original>
